<compile_context>
chip_gen: v7x
topology: tpu7x:2x2x1
jax: 0.10.0
libtpu: 0.0.40
codegen_flags: <defaults>
</compile_context>

<pallas_src>
import functools
import math

import jax
import jax.numpy as jnp
from jax import lax
from jax.experimental import pallas as pl
from jax.experimental.pallas import tpu as pltpu

_LANES = 128
_SQRT2 = math.sqrt(2.0)


# ----------------------------- kernel helpers ------------------------------

def _softmax_lastdim(x, approx_recip):
    m = jnp.max(x, axis=-1, keepdims=True)
    e = jnp.exp(x - m)
    s = jnp.sum(e, axis=-1, keepdims=True)
    if approx_recip:
        # divide -> EUP reciprocal + VPU multiply; frees VALU slots.
        return e * pl.reciprocal(s, approx=True)
    return e / s


# --------------------------------- kernel ----------------------------------

def rw_loss_kernel(protos_ref, feats_ref, out_ref, *, tau, alpha, c, mode,
                   normalize, scale, matmul_dtype, exp_dtype, approx_recip,
                   col_tile):
    protos = protos_ref[...].astype(jnp.float32)   # (P, Fpad)
    feats = feats_ref[...].astype(jnp.float32)     # (N, Fpad)
    P = protos.shape[0]
    N = feats.shape[0]

    if normalize:
        protos = protos * (scale * lax.rsqrt(
            jnp.sum(protos * protos, axis=-1, keepdims=True)))
        feats = feats * (scale * lax.rsqrt(
            jnp.sum(feats * feats, axis=-1, keepdims=True)))

    # f32-accumulating matmuls; operands are cast ONCE by the caller (casts are
    # hoisted out of these helpers -- no per-call re-casts).
    def dotf(a, b):            # (M,K) @ (K,L)
        return lax.dot_general(a, b, (((1,), (0,)), ((), ())),
                               preferred_element_type=jnp.float32)

    def dot_t(a, b):           # (M,K) x (L,K) -> (M,L): contract last dims
        return lax.dot_general(a, b, (((1,), (1,)), ((), ())),
                               preferred_element_type=jnp.float32)

    f_sq = jnp.sum(feats * feats, axis=-1, keepdims=True)    # (N, 1)
    p_sq = jnp.sum(protos * protos, axis=-1, keepdims=True)  # (P, 1)
    f_sq_row = f_sq.T                                         # (1, N)
    p_sq_row = p_sq.T                                         # (1, P)

    # ---- A / A_t (proto <-> feature). Logits kept in f32 for accuracy; the
    # row-constant squared norm is dropped (softmax shift-invariance) and the
    # x2 of the cross term is folded into one operand (protos2 = 2*protos).
    protos2 = protos * 2.0
    A = _softmax_lastdim(dot_t(protos2, feats) - f_sq_row, approx_recip)    # (P, N)
    A = (1.0 - c) * A + c / P
    A_t = _softmax_lastdim(dot_t(feats, protos2) - p_sq_row, approx_recip)  # (N, P)
    A_t = (1.0 - c) * A_t + c / P
    A_t = (1.0 - c) * A_t + c / N      # exact (double) smoothing order of the reference

    inv_p = 1.0 / P
    log_p_const = math.log(P)
    # visiting loss: F.kl_div(A.log(), full(1/P), 'mean') over (P, N) -- uses f32 A.
    visiting = inv_p * (-log_p_const - jnp.mean(jnp.log(A)))

    # Matmul-dtype copies made exactly once (bf16 halves the biggest residents
    # and removes per-tau-step re-cast passes).
    A_mm = A.astype(matmul_dtype)
    A_t_mm = A_t.astype(matmul_dtype)

    # ---- feature <-> feature chain. feats is cast once, pre-scaled by sqrt(2)
    # so the MXU directly yields 2<f_i,f_j> (no (N,N) output-side scaling).
    feats_mm = (feats * _SQRT2).astype(matmul_dtype)

    def d_logits_tile(jt, C):
        cols = feats_mm[jt * C:(jt + 1) * C, :]                       # static slice (C, Fpad)
        lt = dot_t(feats_mm, cols) - f_sq_row[:, jt * C:(jt + 1) * C]  # (N, C)
        ri = lax.broadcasted_iota(jnp.int32, (N, C), 0)
        ci = lax.broadcasted_iota(jnp.int32, (N, C), 1) + jt * C
        return jnp.where(ri == ci, lt - 1000.0, lt)                    # self-loop suppression

    if tau > 1:
        C = N if col_tile is None else min(int(col_tile), N)
        n_tiles = N // C
        if n_tiles <= 1:
            # Full path: keep exp(d_logits - m) resident once in matmul_dtype;
            # the row-sum reciprocal is folded into T each step.
            d = d_logits_tile(0, N)
            m = jnp.max(d, axis=-1, keepdims=True)
            e = jnp.exp((d - m).astype(exp_dtype)).astype(jnp.float32)
            s = jnp.sum(e, axis=-1, keepdims=True)
            E_mm = e.astype(matmul_dtype)
        else:
            # Column-tiled path: (N,N) is never materialized. Pass 1: online
            # row max / row sum over column tiles. Pass 2 (inside step_TB):
            # recompute exp tiles fused with the T@B accumulation.
            # TODO(synk): on v7x, optionally stream bf16 exp tiles via HBM
            # scratch (memory_space=pl.ANY + make_async_copy) instead of recompute.
            m = jnp.full((N, 1), -jnp.inf, dtype=jnp.float32)
            s = jnp.zeros((N, 1), dtype=jnp.float32)
            for jt in range(n_tiles):
                lt = d_logits_tile(jt, C)
                m_new = jnp.maximum(m, jnp.max(lt, axis=-1, keepdims=True))
                s = (s * jnp.exp(m - m_new)
                     + jnp.sum(jnp.exp((lt - m_new).astype(exp_dtype)).astype(jnp.float32),
                               axis=-1, keepdims=True))
                m = m_new
        if approx_recip:
            inv_s = pl.reciprocal(s, approx=True)
        else:
            inv_s = 1.0 / s
        inv_s_row = inv_s.T                                            # (1, N)

        def step_TB(T):
            # T @ B  ==  (T * inv_s_row) @ exp(d_logits - m)
            Ts = (T * inv_s_row).astype(matmul_dtype)                  # (P, N)
            if n_tiles <= 1:
                return dotf(Ts, E_mm)
            chunks = []
            for jt in range(n_tiles):
                e_t = jnp.exp((d_logits_tile(jt, C) - m).astype(exp_dtype))
                chunks.append(dotf(Ts, e_t.astype(matmul_dtype)))      # (P, C)
            return jnp.concatenate(chunks, axis=1)                      # (P, N)

    # ---- closed-form KL losses against constant targets
    if mode == 'creative':
        # F.kl_div(p.log(), full(1/P), 'mean') == (1/P) * (-log P - mean(log p))
        def step_loss(p):
            return inv_p * (-log_p_const - jnp.mean(jnp.log(p)))
    elif mode == 'imitative':
        # F.kl_div(p.log(), eye(P), 'mean') == -(1/P^2) * sum_i log p_ii
        # TODO(synk): unique_cv (labels.unique()) row selection needs dynamic
        # shapes; the labels=None full-identity path is implemented here.
        rp = lax.broadcasted_iota(jnp.int32, (P, P), 0)
        cp = lax.broadcasted_iota(jnp.int32, (P, P), 1)
        diag_mask = rp == cp

        def step_loss(p):
            # extract the diagonal first: P logs instead of P^2 through the EUP
            dvals = jnp.sum(jnp.where(diag_mask, p, 0.0), axis=-1, keepdims=True)
            return -jnp.sum(jnp.log(dvals)) / float(P * P)
    else:
        raise ValueError('Wrong Mode')

    # TODO(synk): binary=True (BCE) branch of creative/imitative loss not implemented.

    # ---- tau-step random walk; loss accumulated in-loop (no live landing list)
    loss = step_loss(dotf(A_mm, A_t_mm))
    T = A
    for i in range(1, tau):
        T = step_TB(T)                                                 # (P, N) f32
        loss = loss + jnp.float32(alpha ** i) * step_loss(
            dotf(T.astype(matmul_dtype), A_t_mm))

    loss = loss + visiting

    # Lane-dense scalar write-back: broadcast into a full (8,128) tile so the
    # store is an unmasked vst; the wrapper reads element [0, 0].
    out_ref[...] = jnp.full(out_ref.shape, loss, dtype=out_ref.dtype)


# -------------------------------- wrappers ----------------------------------

def _pad_lanes(x):
    pad = (-x.shape[-1]) % _LANES
    if pad:
        x = jnp.pad(x, [(0, 0)] * (x.ndim - 1) + [(0, pad)])
    return x


def _vmem_limit_bytes(N, P, Fpad, C, mm_isz, in_isz):
    f32 = 4
    b = 0
    b += 2 * 2 * (N + P) * Fpad * in_isz          # double-buffered input blocks
    b += (N + P) * Fpad * (f32 + mm_isz)          # f32 + matmul-dtype operand copies
    b += N * C * (2 * f32 + mm_isz)               # d-logit / exp tile (+ cast)
    if C >= N:
        b += N * N * mm_isz                       # resident exp(B) (full path)
    b += N * P * (4 * f32 + 2 * mm_isz)           # pf/fp logits, A, A_t (+ mm copies)
    b += P * N * 3 * f32                          # T / scaled / new
    b += P * P * 3 * f32                          # landing + temporaries
    est = int(b * 1.5) + (2 << 20)                # fudge + headroom
    try:
        phys = int(pltpu.get_tpu_info().vmem_capacity_bytes)
    except Exception:
        phys = 64 << 20                           # conservative (v7x per-core VMEM)
    return int(max(32 << 20, min(est, phys - (8 << 20))))


def rw_loss_batched(features, protos, *, tau=3, alpha=0.7, graph_smoothing=0.1,
                    mode='creative', normalize_scale=None,
                    matmul_dtype=jnp.float32, exp_dtype=jnp.float32,
                    approx_softmax=True, b_col_tile=None):
    """features: (B, N, F), protos: (B, P, F)  ->  (B,) f32 losses.

    One pallas_call; the batch of independent loss problems is the (parallel)
    grid axis (megacore-sharded on v7x). Set b_col_tile (divisor of N) to run
    the column-tiled B path that never materializes the (N,N) transition matrix.
    """
    if mode not in ('creative', 'imitative'):
        raise ValueError('Wrong Mode')
    # keep caller dtype: bf16 inputs halve HBM->VMEM DMA and the pipelined input footprint
    features = jnp.asarray(features)
    protos = jnp.asarray(protos)
    B, N, Fdim = features.shape
    Bp, P, Fp = protos.shape
    assert B == Bp and Fdim == Fp

    # Zero-pad the contraction/lane dim to a multiple of 128 (mathematically
    # inert for dot products and squared norms): full MXU contraction and
    # unmasked vector loads.
    feats_p = _pad_lanes(features)
    protos_p = _pad_lanes(protos)
    Fpad = feats_p.shape[-1]

    col_tile = None
    if b_col_tile is not None and int(b_col_tile) < N:
        assert N % int(b_col_tile) == 0, "b_col_tile must divide N"
        col_tile = int(b_col_tile)

    kernel = functools.partial(
        rw_loss_kernel,
        tau=int(tau), alpha=float(alpha), c=float(graph_smoothing), mode=mode,
        normalize=normalize_scale is not None,
        scale=float(normalize_scale) if normalize_scale is not None else 1.0,
        matmul_dtype=matmul_dtype, exp_dtype=exp_dtype,
        approx_recip=bool(approx_softmax), col_tile=col_tile)

    mm_isz = jnp.dtype(matmul_dtype).itemsize
    in_isz = max(feats_p.dtype.itemsize, protos_p.dtype.itemsize)
    C = N if col_tile is None else col_tile
    vmem_limit = _vmem_limit_bytes(N, P, Fpad, C, mm_isz, in_isz)

    tau_i = int(tau)
    n_exp_passes = 1 if col_tile is None else tau_i
    cost = pl.CostEstimate(
        flops=int(2 * B * (n_exp_passes * N * N * Fpad + 2 * P * N * Fpad
                           + max(tau_i - 1, 0) * P * N * N + tau_i * P * P * N)),
        transcendentals=int(B * (n_exp_passes * N * N + 2 * N * P
                                 + tau_i * P * P + P * N)),
        bytes_accessed=int(feats_p.size * feats_p.dtype.itemsize
                           + protos_p.size * protos_p.dtype.itemsize
                           + B * 8 * _LANES * 4),
    )

    # TODO(synk): for B == 1 on v7x, add a second parallel grid axis over row
    # tiles of N (plus a small cross-tile reduction) so both TensorCores are used.
    # TODO(synk): pad P to a sublane multiple with -inf-masked A_t logits for
    # production shapes with tiny P.
    out = pl.pallas_call(
        kernel,
        grid=(B,),
        in_specs=[
            pl.BlockSpec((None, P, Fpad), lambda b: (b, 0, 0)),
            pl.BlockSpec((None, N, Fpad), lambda b: (b, 0, 0)),
        ],
        out_specs=pl.BlockSpec((None, 8, _LANES), lambda b: (b, 0, 0)),
        out_shape=jax.ShapeDtypeStruct((B, 8, _LANES), jnp.float32),
        compiler_params=pltpu.CompilerParams(
            dimension_semantics=("parallel",),
            vmem_limit_bytes=vmem_limit),
        cost_estimate=cost,
    )(protos_p, feats_p)
    return out[:, 0, 0]


def rw_loss(features, protos, **kwargs):
    """Single-problem convenience wrapper: features (N,F), protos (P,F) -> scalar."""
    return rw_loss_batched(features[None], protos[None], **kwargs)[0]


# ------------------------ pure-JAX reference (check) ------------------------

def rw_loss_ref(features, protos, *, tau=3, alpha=0.7, graph_smoothing=0.1,
                mode='creative', normalize_scale=None):
    c = graph_smoothing
    protos = protos.astype(jnp.float32)
    feats = features.astype(jnp.float32)
    P, N = protos.shape[0], feats.shape[0]
    if normalize_scale is not None:
        protos = protos * normalize_scale / jnp.linalg.norm(protos, axis=-1, keepdims=True)
        feats = feats * normalize_scale / jnp.linalg.norm(feats, axis=-1, keepdims=True)

    p_sq = jnp.sum(protos ** 2, -1, keepdims=True)
    f_sq = jnp.sum(feats ** 2, -1, keepdims=True)
    A_raw = -(p_sq + f_sq.T - 2.0 * protos @ feats.T)

    A_t = jax.nn.softmax(A_raw.T, axis=-1)
    A_t = (1 - c) * A_t + c / P
    A = jax.nn.softmax(A_raw, axis=-1)
    A = (1 - c) * A + c / P
    A_t = (1 - c) * A_t + c / N

    D = -(f_sq + f_sq.T - 2.0 * feats @ feats.T) - jnp.eye(N) * 1000.0
    B = jax.nn.softmax(D, axis=-1)

    landing = [A @ A_t]
    T = A
    for _ in range(tau - 1):
        T = T @ B
        landing.append(T @ A_t)

    target = (jnp.full((P, P), 1.0 / P) if mode == 'creative' else jnp.eye(P))

    def kl(p, t):
        return jnp.mean(jnp.where(t > 0, t * (jnp.log(jnp.maximum(t, 1e-30)) - jnp.log(p)), 0.0))

    loss = 0.0
    for i, p in enumerate(landing):
        loss = loss + alpha ** i * kl(p, target)
    loss = loss + kl(A, jnp.full((P, N), 1.0 / P))
    return loss


# ---------------------------------- main ------------------------------------

if __name__ == "__main__":
    key = jax.random.PRNGKey(0)
    k_feat, k_proto, k_f2, k_p2 = jax.random.split(key, 4)

    Bnum, N, Fdim, P = 3, 8, 32, 4   # problems, batch features, feature dim, protos
    features_b = jax.random.normal(k_feat, (Bnum, N, Fdim), dtype=jnp.float32)
    # synthetic deterministic prototypes (stand-in for compute_protos output)
    protos_b = jax.random.normal(k_proto, (Bnum, P, Fdim), dtype=jnp.float32)
    features, protos = features_b[0], protos_b[0]

    # single-problem calls (creative / imitative / normalized prototypes)
    loss_creative = rw_loss(features, protos, tau=3, alpha=0.7,
                            graph_smoothing=0.1, mode='creative')
    loss_imitative = rw_loss(features, protos, tau=3, alpha=0.7,
                             graph_smoothing=0.1, mode='imitative')
    loss_norm = rw_loss(features, protos, tau=3, alpha=0.7,
                        graph_smoothing=0.1, mode='creative',
                        normalize_scale=10.0)
    # batched call: one pallas_call, parallel grid over independent problems
    loss_batch = rw_loss_batched(features_b, protos_b, tau=3, alpha=0.7,
                                 graph_smoothing=0.1, mode='creative')
    # bf16 MXU path: bf16 inputs (half DMA), bf16 B/A_t/T-chain operands,
    # bf16 exponent for the big B softmax (v6e/v7x EUP); A/A_t logits stay f32.
    feats_bf = features.astype(jnp.bfloat16)
    protos_bf = protos.astype(jnp.bfloat16)
    loss_bf16 = rw_loss(feats_bf, protos_bf, tau=3, alpha=0.7,
                        graph_smoothing=0.1, mode='creative',
                        matmul_dtype=jnp.bfloat16, exp_dtype=jnp.bfloat16)

    # larger problem exercising the column-tiled (VMEM-bounded) B path
    N2, F2, P2 = 256, 64, 16
    feats_big = jax.random.normal(k_f2, (N2, F2), dtype=jnp.float32)
    protos_big = jax.random.normal(k_p2, (P2, F2), dtype=jnp.float32)
    loss_tiled = rw_loss(feats_big, protos_big, tau=3, alpha=0.7,
                         graph_smoothing=0.1, mode='creative', b_col_tile=128)

    jax.block_until_ready((loss_creative, loss_imitative, loss_norm,
                           loss_batch, loss_bf16, loss_tiled))

    ref_c = rw_loss_ref(features, protos, mode='creative')
    ref_i = rw_loss_ref(features, protos, mode='imitative')
    ref_n = rw_loss_ref(features, protos, mode='creative', normalize_scale=10.0)
    ref_b = jnp.stack([rw_loss_ref(features_b[i], protos_b[i], mode='creative')
                       for i in range(Bnum)])
    ref_bf = rw_loss_ref(feats_bf.astype(jnp.float32), protos_bf.astype(jnp.float32),
                         mode='creative')
    ref_t = rw_loss_ref(feats_big, protos_big, mode='creative')

    for v in (loss_creative, loss_imitative, loss_norm, loss_bf16, loss_tiled):
        assert jnp.isfinite(v)
    assert bool(jnp.all(jnp.isfinite(loss_batch)))

    # tolerance accounts for the EUP approximate-reciprocal softmax path
    tol = dict(rtol=2e-2, atol=5e-3)
    assert jnp.allclose(loss_creative, ref_c, **tol), (loss_creative, ref_c)
    assert jnp.allclose(loss_imitative, ref_i, **tol), (loss_imitative, ref_i)
    assert jnp.allclose(loss_norm, ref_n, **tol), (loss_norm, ref_n)
    assert jnp.allclose(loss_batch, ref_b, **tol), (loss_batch, ref_b)
    assert jnp.allclose(loss_tiled, ref_t, rtol=5e-2, atol=1e-2), (loss_tiled, ref_t)
    # bf16 MXU/EUP operands: loose sanity check only (quantized distance logits)
    assert jnp.allclose(loss_bf16, ref_bf, rtol=0.25, atol=0.1), (loss_bf16, ref_bf)

    print("KERNEL_OK")
</pallas_src>

<mosaic_0001>
module attributes {stable_mosaic.version = 11 : i64} {
  func.func @rw_loss_kernel(%arg0: i32, %arg1: memref<1x4x128xf32, #tpu.memory_space<vmem>>, %arg2: memref<1x8x128xf32, #tpu.memory_space<vmem>>, %arg3: memref<1x8x128xf32, #tpu.memory_space<vmem>>) attributes {dimension_semantics = [#tpu.dimension_semantics<parallel>], iteration_bounds = array<i64: 1>, scalar_prefetch = 0 : i64, scratch_operands = 0 : i64, tpu.core_type = #tpu.core_type<tc>, window_params = [{transform_indices = @transform_0, window_bounds = array<i64: 1, 4, 128>}, {transform_indices = @transform_1, window_bounds = array<i64: 1, 8, 128>}, {transform_indices = @transform_2, window_bounds = array<i64: 1, 8, 128>}]} {
    %c0 = arith.constant 0 : index
    %c0_0 = arith.constant 0 : index
    %c0_1 = arith.constant 0 : index
    %0 = vector.load %arg1[%c0, %c0_0, %c0_1] : memref<1x4x128xf32, #tpu.memory_space<vmem>>, vector<1x4x128xf32>
    %1 = vector.shape_cast %0 : vector<1x4x128xf32> to vector<4x128xf32>
    %c0_2 = arith.constant 0 : index
    %c0_3 = arith.constant 0 : index
    %c0_4 = arith.constant 0 : index
    %2 = vector.load %arg2[%c0_2, %c0_3, %c0_4] : memref<1x8x128xf32, #tpu.memory_space<vmem>>, vector<1x8x128xf32>
    %3 = vector.shape_cast %2 : vector<1x8x128xf32> to vector<8x128xf32>
    %4 = arith.mulf %3, %3 : vector<8x128xf32>
    %cst = arith.constant dense<0.000000e+00> : vector<8xf32>
    %5 = vector.multi_reduction <add>, %4, %cst [1] : vector<8x128xf32> to vector<8xf32>
    %6 = vector.shape_cast %5 : vector<8xf32> to vector<8x1xf32>
    %7 = arith.mulf %1, %1 : vector<4x128xf32>
    %cst_5 = arith.constant dense<0.000000e+00> : vector<4xf32>
    %8 = vector.multi_reduction <add>, %7, %cst_5 [1] : vector<4x128xf32> to vector<4xf32>
    %9 = vector.shape_cast %8 : vector<4xf32> to vector<4x1xf32>
    %10 = tpu.transpose %6, [1, 0] : vector<8x1xf32> -> vector<1x8xf32>
    %11 = tpu.transpose %9, [1, 0] : vector<4x1xf32> -> vector<1x4xf32>
    %cst_6 = arith.constant 2.000000e+00 : f32
    %12 = vector.broadcast %cst_6 : f32 to vector<4x128xf32>
    %13 = arith.mulf %1, %12 : vector<4x128xf32>
    %cst_7 = arith.constant dense<0.000000e+00> : vector<4x8xf32>
    %14 = tpu.matmul %13, %3, %cst_7 {dimension_numbers = #tpu.dot_dimension_numbers<[1], [1], [0], [0], [0, 0, 1, 0], [], []>} : vector<4x128xf32>, vector<8x128xf32>, vector<4x8xf32> -> vector<4x8xf32>
    %15 = vector.broadcast %10 : vector<1x8xf32> to vector<4x8xf32>
    %16 = arith.subf %14, %15 : vector<4x8xf32>
    %cst_8 = arith.constant dense<0xFF800000> : vector<4xf32>
    %17 = vector.multi_reduction <maximumf>, %16, %cst_8 [1] : vector<4x8xf32> to vector<4xf32>
    %18 = vector.shape_cast %17 : vector<4xf32> to vector<4x1xf32>
    %19 = vector.broadcast %18 : vector<4x1xf32> to vector<4x8xf32>
    %20 = arith.subf %16, %19 : vector<4x8xf32>
    %21 = math.exp %20 : vector<4x8xf32>
    %cst_9 = arith.constant dense<0.000000e+00> : vector<4xf32>
    %22 = vector.multi_reduction <add>, %21, %cst_9 [1] : vector<4x8xf32> to vector<4xf32>
    %23 = vector.shape_cast %22 : vector<4xf32> to vector<4x1xf32>
    %24 = tpu.reciprocal %23 {approx = true} : vector<4x1xf32> -> vector<4x1xf32>
    %25 = vector.broadcast %24 : vector<4x1xf32> to vector<4x8xf32>
    %26 = arith.mulf %21, %25 : vector<4x8xf32>
    %cst_10 = arith.constant 0.899999976 : f32
    %27 = vector.broadcast %cst_10 : f32 to vector<4x8xf32>
    %28 = arith.mulf %27, %26 : vector<4x8xf32>
    %cst_11 = arith.constant 2.500000e-02 : f32
    %29 = vector.broadcast %cst_11 : f32 to vector<4x8xf32>
    %30 = arith.addf %28, %29 : vector<4x8xf32>
    %cst_12 = arith.constant dense<0.000000e+00> : vector<8x4xf32>
    %31 = tpu.matmul %3, %13, %cst_12 {dimension_numbers = #tpu.dot_dimension_numbers<[1], [1], [0], [0], [0, 0, 1, 0], [], []>} : vector<8x128xf32>, vector<4x128xf32>, vector<8x4xf32> -> vector<8x4xf32>
    %32 = vector.broadcast %11 : vector<1x4xf32> to vector<8x4xf32>
    %33 = arith.subf %31, %32 : vector<8x4xf32>
    %cst_13 = arith.constant dense<0xFF800000> : vector<8xf32>
    %34 = vector.multi_reduction <maximumf>, %33, %cst_13 [1] : vector<8x4xf32> to vector<8xf32>
    %35 = vector.shape_cast %34 : vector<8xf32> to vector<8x1xf32>
    %36 = vector.broadcast %35 : vector<8x1xf32> to vector<8x4xf32>
    %37 = arith.subf %33, %36 : vector<8x4xf32>
    %38 = math.exp %37 : vector<8x4xf32>
    %cst_14 = arith.constant dense<0.000000e+00> : vector<8xf32>
    %39 = vector.multi_reduction <add>, %38, %cst_14 [1] : vector<8x4xf32> to vector<8xf32>
    %40 = vector.shape_cast %39 : vector<8xf32> to vector<8x1xf32>
    %41 = tpu.reciprocal %40 {approx = true} : vector<8x1xf32> -> vector<8x1xf32>
    %42 = vector.broadcast %41 : vector<8x1xf32> to vector<8x4xf32>
    %43 = arith.mulf %38, %42 : vector<8x4xf32>
    %cst_15 = arith.constant 0.899999976 : f32
    %44 = vector.broadcast %cst_15 : f32 to vector<8x4xf32>
    %45 = arith.mulf %44, %43 : vector<8x4xf32>
    %cst_16 = arith.constant 2.500000e-02 : f32
    %46 = vector.broadcast %cst_16 : f32 to vector<8x4xf32>
    %47 = arith.addf %45, %46 : vector<8x4xf32>
    %cst_17 = arith.constant 0.899999976 : f32
    %48 = vector.broadcast %cst_17 : f32 to vector<8x4xf32>
    %49 = arith.mulf %48, %47 : vector<8x4xf32>
    %cst_18 = arith.constant 1.250000e-02 : f32
    %50 = vector.broadcast %cst_18 : f32 to vector<8x4xf32>
    %51 = arith.addf %49, %50 : vector<8x4xf32>
    %52 = math.log %30 : vector<4x8xf32>
    %53 = vector.shape_cast %52 : vector<4x8xf32> to vector<1x4x8xf32>
    %cst_19 = arith.constant dense<0.000000e+00> : vector<1xf32>
    %54 = vector.multi_reduction <add>, %53, %cst_19 [1, 2] : vector<1x4x8xf32> to vector<1xf32>
    %55 = vector.shape_cast %54 : vector<1xf32> to vector<1x1x1xf32>
    %56 = vector.extract %55[0, 0, 0] : f32 from vector<1x1x1xf32>
    %cst_20 = arith.constant 3.200000e+01 : f32
    %57 = arith.divf %56, %cst_20 : f32
    %cst_21 = arith.constant -1.38629436 : f32
    %58 = arith.subf %cst_21, %57 : f32
    %cst_22 = arith.constant 2.500000e-01 : f32
    %59 = arith.mulf %cst_22, %58 : f32
    %cst_23 = arith.constant 1.41421354 : f32
    %60 = vector.broadcast %cst_23 : f32 to vector<8x128xf32>
    %61 = arith.mulf %3, %60 : vector<8x128xf32>
    %cst_24 = arith.constant dense<0.000000e+00> : vector<8x8xf32>
    %62 = tpu.matmul %61, %61, %cst_24 {dimension_numbers = #tpu.dot_dimension_numbers<[1], [1], [0], [0], [0, 0, 1, 0], [], []>} : vector<8x128xf32>, vector<8x128xf32>, vector<8x8xf32> -> vector<8x8xf32>
    %63 = vector.broadcast %10 : vector<1x8xf32> to vector<8x8xf32>
    %64 = arith.subf %62, %63 : vector<8x8xf32>
    %65 = tpu.iota {dimensions = array<i32: 0>} : vector<8x8xi32>
    %66 = tpu.iota {dimensions = array<i32: 1>} : vector<8x8xi32>
    %c0_i32 = arith.constant 0 : i32
    %67 = vector.broadcast %c0_i32 : i32 to vector<8x8xi32>
    %68 = arith.addi %66, %67 : vector<8x8xi32>
    %69 = arith.cmpi eq, %65, %68 : vector<8x8xi32>
    %cst_25 = arith.constant 1.000000e+03 : f32
    %70 = vector.broadcast %cst_25 : f32 to vector<8x8xf32>
    %71 = arith.subf %64, %70 : vector<8x8xf32>
    %72 = arith.select %69, %71, %64 : vector<8x8xi1>, vector<8x8xf32>
    %cst_26 = arith.constant dense<0xFF800000> : vector<8xf32>
    %73 = vector.multi_reduction <maximumf>, %72, %cst_26 [1] : vector<8x8xf32> to vector<8xf32>
    %74 = vector.shape_cast %73 : vector<8xf32> to vector<8x1xf32>
    %75 = vector.broadcast %74 : vector<8x1xf32> to vector<8x8xf32>
    %76 = arith.subf %72, %75 : vector<8x8xf32>
    %77 = math.exp %76 : vector<8x8xf32>
    %cst_27 = arith.constant dense<0.000000e+00> : vector<8xf32>
    %78 = vector.multi_reduction <add>, %77, %cst_27 [1] : vector<8x8xf32> to vector<8xf32>
    %79 = vector.shape_cast %78 : vector<8xf32> to vector<8x1xf32>
    %80 = tpu.reciprocal %79 {approx = true} : vector<8x1xf32> -> vector<8x1xf32>
    %81 = tpu.transpose %80, [1, 0] : vector<8x1xf32> -> vector<1x8xf32>
    %cst_28 = arith.constant dense<0.000000e+00> : vector<4x4xf32>
    %82 = tpu.matmul %30, %51, %cst_28 {dimension_numbers = #tpu.dot_dimension_numbers<[1], [0], [0], [1], [0, 0, 1, 1], [], []>} : vector<4x8xf32>, vector<8x4xf32>, vector<4x4xf32> -> vector<4x4xf32>
    %83 = math.log %82 : vector<4x4xf32>
    %84 = vector.shape_cast %83 : vector<4x4xf32> to vector<1x4x4xf32>
    %cst_29 = arith.constant dense<0.000000e+00> : vector<1xf32>
    %85 = vector.multi_reduction <add>, %84, %cst_29 [1, 2] : vector<1x4x4xf32> to vector<1xf32>
    %86 = vector.shape_cast %85 : vector<1xf32> to vector<1x1x1xf32>
    %87 = vector.extract %86[0, 0, 0] : f32 from vector<1x1x1xf32>
    %cst_30 = arith.constant 1.600000e+01 : f32
    %88 = arith.divf %87, %cst_30 : f32
    %cst_31 = arith.constant -1.38629436 : f32
    %89 = arith.subf %cst_31, %88 : f32
    %cst_32 = arith.constant 2.500000e-01 : f32
    %90 = arith.mulf %cst_32, %89 : f32
    %91 = vector.broadcast %81 : vector<1x8xf32> to vector<4x8xf32>
    %92 = arith.mulf %30, %91 : vector<4x8xf32>
    %cst_33 = arith.constant dense<0.000000e+00> : vector<4x8xf32>
    %93 = tpu.matmul %92, %77, %cst_33 {dimension_numbers = #tpu.dot_dimension_numbers<[1], [0], [0], [1], [0, 0, 1, 1], [], []>} : vector<4x8xf32>, vector<8x8xf32>, vector<4x8xf32> -> vector<4x8xf32>
    %cst_34 = arith.constant dense<0.000000e+00> : vector<4x4xf32>
    %94 = tpu.matmul %93, %51, %cst_34 {dimension_numbers = #tpu.dot_dimension_numbers<[1], [0], [0], [1], [0, 0, 1, 1], [], []>} : vector<4x8xf32>, vector<8x4xf32>, vector<4x4xf32> -> vector<4x4xf32>
    %95 = math.log %94 : vector<4x4xf32>
    %96 = vector.shape_cast %95 : vector<4x4xf32> to vector<1x4x4xf32>
    %cst_35 = arith.constant dense<0.000000e+00> : vector<1xf32>
    %97 = vector.multi_reduction <add>, %96, %cst_35 [1, 2] : vector<1x4x4xf32> to vector<1xf32>
    %98 = vector.shape_cast %97 : vector<1xf32> to vector<1x1x1xf32>
    %99 = vector.extract %98[0, 0, 0] : f32 from vector<1x1x1xf32>
    %cst_36 = arith.constant 1.600000e+01 : f32
    %100 = arith.divf %99, %cst_36 : f32
    %cst_37 = arith.constant -1.38629436 : f32
    %101 = arith.subf %cst_37, %100 : f32
    %cst_38 = arith.constant 2.500000e-01 : f32
    %102 = arith.mulf %cst_38, %101 : f32
    %cst_39 = arith.constant 0.699999988 : f32
    %103 = arith.mulf %cst_39, %102 : f32
    %104 = arith.addf %90, %103 : f32
    %105 = vector.broadcast %81 : vector<1x8xf32> to vector<4x8xf32>
    %106 = arith.mulf %93, %105 : vector<4x8xf32>
    %cst_40 = arith.constant dense<0.000000e+00> : vector<4x8xf32>
    %107 = tpu.matmul %106, %77, %cst_40 {dimension_numbers = #tpu.dot_dimension_numbers<[1], [0], [0], [1], [0, 0, 1, 1], [], []>} : vector<4x8xf32>, vector<8x8xf32>, vector<4x8xf32> -> vector<4x8xf32>
    %cst_41 = arith.constant dense<0.000000e+00> : vector<4x4xf32>
    %108 = tpu.matmul %107, %51, %cst_41 {dimension_numbers = #tpu.dot_dimension_numbers<[1], [0], [0], [1], [0, 0, 1, 1], [], []>} : vector<4x8xf32>, vector<8x4xf32>, vector<4x4xf32> -> vector<4x4xf32>
    %109 = math.log %108 : vector<4x4xf32>
    %110 = vector.shape_cast %109 : vector<4x4xf32> to vector<1x4x4xf32>
    %cst_42 = arith.constant dense<0.000000e+00> : vector<1xf32>
    %111 = vector.multi_reduction <add>, %110, %cst_42 [1, 2] : vector<1x4x4xf32> to vector<1xf32>
    %112 = vector.shape_cast %111 : vector<1xf32> to vector<1x1x1xf32>
    %113 = vector.extract %112[0, 0, 0] : f32 from vector<1x1x1xf32>
    %cst_43 = arith.constant 1.600000e+01 : f32
    %114 = arith.divf %113, %cst_43 : f32
    %cst_44 = arith.constant -1.38629436 : f32
    %115 = arith.subf %cst_44, %114 : f32
    %cst_45 = arith.constant 2.500000e-01 : f32
    %116 = arith.mulf %cst_45, %115 : f32
    %cst_46 = arith.constant 4.900000e-01 : f32
    %117 = arith.mulf %cst_46, %116 : f32
    %118 = arith.addf %104, %117 : f32
    %119 = arith.addf %118, %59 : f32
    %120 = vector.broadcast %119 : f32 to vector<8x128xf32>
    %c0_47 = arith.constant 0 : index
    %c0_48 = arith.constant 0 : index
    %c0_49 = arith.constant 0 : index
    %121 = vector.load %arg3[%c0_47, %c0_48, %c0_49] : memref<1x8x128xf32, #tpu.memory_space<vmem>>, vector<1x8x128xf32>
    %122 = vector.shape_cast %121 : vector<1x8x128xf32> to vector<8x128xf32>
    %123 = vector.shape_cast %120 : vector<8x128xf32> to vector<1x8x128xf32>
    tpu.vector_store %arg3[%c0_47, %c0_48, %c0_49], %123 {strides = array<i32>} : memref<1x8x128xf32, #tpu.memory_space<vmem>>, vector<1x8x128xf32>,
    return
  }
  func.func @transform_0(%arg0: i32) -> (i32, i32, i32) {
    %c0_i32 = arith.constant 0 : i32
    %c0_i32_0 = arith.constant 0 : i32
    %c0_i32_1 = arith.constant 0 : i32
    return %arg0, %c0_i32, %c0_i32_0 : i32, i32, i32
  }
  func.func @transform_1(%arg0: i32) -> (i32, i32, i32) {
    %c0_i32 = arith.constant 0 : i32
    %c0_i32_0 = arith.constant 0 : i32
    %c0_i32_1 = arith.constant 0 : i32
    return %arg0, %c0_i32, %c0_i32_0 : i32, i32, i32
  }
  func.func @transform_2(%arg0: i32) -> (i32, i32, i32) {
    %c0_i32 = arith.constant 0 : i32
    %c0_i32_0 = arith.constant 0 : i32
    %c0_i32_1 = arith.constant 0 : i32
    return %arg0, %c0_i32, %c0_i32_0 : i32, i32, i32
  }
}

</mosaic_0001>

<llo_original>
// kernel: tpu_custom_call.1
$region0: #{tpu_custom_call.1}
  #allocation0 [shape = 'u32[]', space=smem, size = 0x4, offset = 0x4, fixed_abs, tag = 'smem constant byte address 0x4 - core index']
  #allocation1 [shape = 'u32[144,128]{1,0:T(1,128)}', space=vmem, size = 0x12000, scoped, tag = 'internal scratch']
  %s0 = inlined_call_operand.hbm [shape: f32[1,4,128], index: 0, kind: input, shape index: {}]
  %s1 = inlined_call_operand.hbm [shape: f32[1,8,128], index: 1, kind: input, shape index: {}]
  %s2 = inlined_call_operand.hbm [shape: f32[1,8,128], index: 2, kind: output, shape index: {}]
  %s3 = sld [smem:[#allocation0]]
  $region26: #{tpu_custom_call.1} parent=0
    _
  %s5 = ssub.s32 1, %s3
  %s6 = scalar_select 0, %s5, %s3
  $region1: #{tpu_custom_call.1} parent=0
    #allocation2 [shape = 'u8[2048]{0}', space=vmem, size = 0x800, scoped, tag = 'input window, operand 0, single buffered']
    #allocation3 [shape = 's32[1]{0}', space=sflag, size = 0x4, scoped, tag = 'scoped memory for tpu_custom_call.1']
    #allocation4 [shape = 's32[1]{0}', space=sflag, size = 0x4, scoped, tag = 'scoped memory for tpu_custom_call.1']
    #allocation5 [shape = 'u8[4096]{0}', space=vmem, size = 0x1000, scoped, tag = 'input window, operand 1, single buffered']
    #allocation6 [shape = 's32[1]{0}', space=sflag, size = 0x4, scoped, tag = 'scoped memory for tpu_custom_call.1']
    #allocation7 [shape = 'u8[4096]{0}', space=vmem, size = 0x1000, scoped, tag = 'output window, operand 0, single buffered']
    %7 = vsyncpa [#allocation3], 0
    %8 = vsyncpa [#allocation6], 0
    %9 = vsyncpa [#allocation4], 0
    // Predicated region
    $region2: #{tpu_custom_call.1} parent=1 // pred_check
      _
    $region3: #{tpu_custom_call.1} parent=1 // pred_check_branch
      %11 = sbr.rel (0) target = $region5
    $region4: #{tpu_custom_call.1} parent=1 // pred_region
      %s13 = ssub.s32 64, 64
      %14 = vsyncadd [#allocation3], %s13
      %s16 = sshll.u32 [#allocation2], 4
      %s17 = int_to_ptr.vmem [resolvable:$true] %s16
      %19 = dma.hbm_to_vmem [thread:$0]  %s0, 64, %s17, [#allocation3]
    $region5: #{tpu_custom_call.1} parent=1 // pred_fallthru
      _
    // Predicated region
    $region6: #{tpu_custom_call.1} parent=1 // pred_check
      _
    $region7: #{tpu_custom_call.1} parent=1 // pred_check_branch
      %21 = sbr.rel (0) target = $region9
    $region8: #{tpu_custom_call.1} parent=1 // pred_region
      %s23 = ssub.s32 128, 128
      %24 = vsyncadd [#allocation6], %s23
      %s26 = sshll.u32 [#allocation5], 4
      %s27 = int_to_ptr.vmem [resolvable:$true] %s26
      %29 = dma.hbm_to_vmem [thread:$0]  %s1, 128, %s27, [#allocation6]
    $region9: #{tpu_custom_call.1} parent=1 // pred_fallthru
      _
    // Predicated region
    $region10: #{tpu_custom_call.1} parent=1 // pred_check
      _
    $region11: #{tpu_custom_call.1} parent=1 // pred_check_branch
      %31 = sbr.rel (0) target = $region13
    $region12: #{tpu_custom_call.1} parent=1 // pred_region
      %32 = dma.done [#allocation3], 64
    $region13: #{tpu_custom_call.1} parent=1 // pred_fallthru
      _
    // Predicated region
    $region14: #{tpu_custom_call.1} parent=1 // pred_check
      _
    $region15: #{tpu_custom_call.1} parent=1 // pred_check_branch
      %34 = sbr.rel (0) target = $region17
    $region16: #{tpu_custom_call.1} parent=1 // pred_region
      %35 = dma.done [#allocation6], 128
    $region17: #{tpu_custom_call.1} parent=1 // pred_fallthru
      _
    %v36 = vld [vmem:[#allocation2] sm:$0xf]
    %v37 = vld [vmem:[#allocation5] sm:$0xff]
    %v38 = vmul.f32 %v37, %v37
    %39 = vadd.xlane.f32.xlu0 %v38
    %v40 = vpop.xlane.xlu0 %39
    %v41 = vmul.f32 %v36, %v36
    %vm42 = vcmask 1043456
    %v43 = vsel %vm42, %v41, 0.0
    %44 = vadd.xlane.f32.xlu0 %v43
    %v45 = vpop.xlane.xlu0 %44
    %46 = vxpose.xlu0.b32.start [1/16] %v40, 128
    %47 = vxpose.xlu0.b32.cont [2/16] 0.0, 128
    %48 = vxpose.xlu0.b32.cont [3/16] 0.0, 128
    %49 = vxpose.xlu0.b32.cont [4/16] 0.0, 128
    %50 = vxpose.xlu0.b32.cont [5/16] 0.0, 128
    %51 = vxpose.xlu0.b32.cont [6/16] 0.0, 128
    %52 = vxpose.xlu0.b32.cont [7/16] 0.0, 128
    %53 = vxpose.xlu0.b32.cont [8/16] 0.0, 128
    %54 = vxpose.xlu0.b32.cont [9/16] 0.0, 128
    %55 = vxpose.xlu0.b32.cont [10/16] 0.0, 128
    %56 = vxpose.xlu0.b32.cont [11/16] 0.0, 128
    %57 = vxpose.xlu0.b32.cont [12/16] 0.0, 128
    %58 = vxpose.xlu0.b32.cont [13/16] 0.0, 128
    %59 = vxpose.xlu0.b32.cont [14/16] 0.0, 128
    %60 = vxpose.xlu0.b32.cont [15/16] 0.0, 128
    %61 = vxpose.xlu0.b32.end [16/16] 0.0, 128
    %v62 = vpop.trf.xlu0
    %v63 = vpop.trf.xlu0
    %v64 = vpop.trf.xlu0
    %v65 = vpop.trf.xlu0
    %v66 = vpop.trf.xlu0
    %v67 = vpop.trf.xlu0
    %v68 = vpop.trf.xlu0
    %v69 = vpop.trf.xlu0
    %v70 = vpop.trf.xlu0
    %v71 = vpop.trf.xlu0
    %v72 = vpop.trf.xlu0
    %v73 = vpop.trf.xlu0
    %v74 = vpop.trf.xlu0
    %v75 = vpop.trf.xlu0
    %v76 = vpop.trf.xlu0
    %v77 = vpop.trf.xlu0
    %78 = vxpose.xlu0.b32.start [1/16] %v45, 128
    %79 = vxpose.xlu0.b32.cont [2/16] 0.0, 128
    %80 = vxpose.xlu0.b32.cont [3/16] 0.0, 128
    %81 = vxpose.xlu0.b32.cont [4/16] 0.0, 128
    %82 = vxpose.xlu0.b32.cont [5/16] 0.0, 128
    %83 = vxpose.xlu0.b32.cont [6/16] 0.0, 128
    %84 = vxpose.xlu0.b32.cont [7/16] 0.0, 128
    %85 = vxpose.xlu0.b32.cont [8/16] 0.0, 128
    %86 = vxpose.xlu0.b32.cont [9/16] 0.0, 128
    %87 = vxpose.xlu0.b32.cont [10/16] 0.0, 128
    %88 = vxpose.xlu0.b32.cont [11/16] 0.0, 128
    %89 = vxpose.xlu0.b32.cont [12/16] 0.0, 128
    %90 = vxpose.xlu0.b32.cont [13/16] 0.0, 128
    %91 = vxpose.xlu0.b32.cont [14/16] 0.0, 128
    %92 = vxpose.xlu0.b32.cont [15/16] 0.0, 128
    %93 = vxpose.xlu0.b32.end [16/16] 0.0, 128
    %v94 = vpop.trf.xlu0
    %v95 = vpop.trf.xlu0
    %v96 = vpop.trf.xlu0
    %v97 = vpop.trf.xlu0
    %v98 = vpop.trf.xlu0
    %v99 = vpop.trf.xlu0
    %v100 = vpop.trf.xlu0
    %v101 = vpop.trf.xlu0
    %v102 = vpop.trf.xlu0
    %v103 = vpop.trf.xlu0
    %v104 = vpop.trf.xlu0
    %v105 = vpop.trf.xlu0
    %v106 = vpop.trf.xlu0
    %v107 = vpop.trf.xlu0
    %v108 = vpop.trf.xlu0
    %v109 = vpop.trf.xlu0
    %v110 = vmul.f32 %v36, 2.0
    %111 = vmatprep.subr.mxu0 0.0
    %112 = vmatpush1.xpose.msra.mxu0 %v37
    %113 = vmatprep.subr.mxu0 0.0
    %114 = vmatpush1.xpose.msra.mxu0 0.0
    %115 = vmatprep.subr.mxu0 0.0
    %116 = vmatpush1.xpose.msra.mxu0 0.0
    %117 = vmatprep.subr.mxu0 0.0
    %118 = vmatpush1.xpose.msra.mxu0 0.0
    %119 = vmatprep.subr.mxu0 0.0
    %120 = vmatpush1.xpose.msra.mxu0 0.0
    %121 = vmatprep.subr.mxu0 0.0
    %122 = vmatpush1.xpose.msra.mxu0 0.0
    %123 = vmatprep.subr.mxu0 0.0
    %124 = vmatpush1.xpose.msra.mxu0 0.0
    %125 = vmatprep.subr.mxu0 0.0
    %126 = vmatpush1.xpose.msra.mxu0 0.0
    %127 = vmatprep.subr.mxu0 0.0
    %128 = vmatpush1.xpose.msra.mxu0 0.0
    %129 = vmatprep.subr.mxu0 0.0
    %130 = vmatpush1.xpose.msra.mxu0 0.0
    %131 = vmatprep.subr.mxu0 0.0
    %132 = vmatpush1.xpose.msra.mxu0 0.0
    %133 = vmatprep.subr.mxu0 0.0
    %134 = vmatpush1.xpose.msra.mxu0 0.0
    %135 = vmatprep.subr.mxu0 0.0
    %136 = vmatpush1.xpose.msra.mxu0 0.0
    %137 = vmatprep.subr.mxu0 0.0
    %138 = vmatpush1.xpose.msra.mxu0 0.0
    %139 = vmatprep.subr.mxu0 0.0
    %140 = vmatpush1.xpose.msra.mxu0 0.0
    %141 = vmatprep.subr.mxu0 0.0
    %142 = vmatpush1.xpose.msra.mxu0 0.0
    %143 = vmatprep.subr.mxu0 0.0
    %144 = vmatpush1.xpose.msra.mxu0 0.0
    %145 = vmatprep.subr.mxu0 0.0
    %146 = vmatpush1.xpose.msra.mxu0 0.0
    %147 = vmatprep.subr.mxu0 0.0
    %148 = vmatpush1.xpose.msra.mxu0 0.0
    %149 = vmatprep.subr.mxu0 0.0
    %150 = vmatpush1.xpose.msra.mxu0 0.0
    %151 = vmatprep.subr.mxu0 0.0
    %152 = vmatpush1.xpose.msra.mxu0 0.0
    %153 = vmatprep.subr.mxu0 0.0
    %154 = vmatpush1.xpose.msra.mxu0 0.0
    %155 = vmatprep.subr.mxu0 0.0
    %156 = vmatpush1.xpose.msra.mxu0 0.0
    %157 = vmatprep.subr.mxu0 0.0
    %158 = vmatpush1.xpose.msra.mxu0 0.0
    %159 = vmatprep.subr.mxu0 0.0
    %160 = vmatpush1.xpose.msra.mxu0 0.0
    %161 = vmatprep.subr.mxu0 0.0
    %162 = vmatpush1.xpose.msra.mxu0 0.0
    %163 = vmatprep.subr.mxu0 0.0
    %164 = vmatpush1.xpose.msra.mxu0 0.0
    %165 = vmatprep.subr.mxu0 0.0
    %166 = vmatpush1.xpose.msra.mxu0 0.0
    %167 = vmatprep.subr.mxu0 0.0
    %168 = vmatpush1.xpose.msra.mxu0 0.0
    %169 = vmatprep.subr.mxu0 0.0
    %170 = vmatpush1.xpose.msra.mxu0 0.0
    %171 = vmatprep.subr.mxu0 0.0
    %172 = vmatpush1.xpose.msra.mxu0 0.0
    %173 = vmatprep.subr.mxu0 0.0
    %174 = vmatpush1.xpose.msra.mxu0 0.0
    %175 = vmatprep.mubr.f32.mxu0 0.0
    %176 = vmatmul.mubr.f32.gmra.mrb[0].mxu0 %v110
    %v177 = vpop.f32.mrb[0].mxu0
    %v178 = vadd.f32 0.0, %v177
    %v179 = vpop.f32.mrb[0].mxu0
    %180 = vdwg.mxu0
    %v181 = vlaneseq
    %v182 = vshrl.u32 %v181, 7
    %v183 = vsub.s32 0, %v182
    %v184 = vrot.slane %v62, %v183
    %v185 = vsub.f32 %v178, %v184
    %vm186 = vcmask 60416
    %v187 = vsel %vm186, %v185, -inf
    %188 = vmax.xlane.f32.xlu0 %v187
    %v189 = vpop.xlane.xlu0 %188
    %v190 = vsub.f32 %v185, %v189
    %v191 = vmul.f32 %v190, 1.442695
    %v192 = vpow.pop %v191
    %v193 = vsel %vm186, %v192, 0.0
    %194 = vadd.xlane.f32.xlu0 %v193
    %v195 = vpop.xlane.xlu0 %194
    %v196 = vrcp.pop %v195
    %v197 = vmul.f32 %v192, %v196
    %v198 = vmul.f32 %v197, 0.9
    %v199 = vadd.f32 %v198, 0.025
    %200 = vmatprep.subr.mxu0 0.0
    %201 = vmatpush1.xpose.msra.mxu0 %v110
    %202 = vmatprep.subr.mxu0 0.0
    %203 = vmatpush1.xpose.msra.mxu0 0.0
    %204 = vmatprep.subr.mxu0 0.0
    %205 = vmatpush1.xpose.msra.mxu0 0.0
    %206 = vmatprep.subr.mxu0 0.0
    %207 = vmatpush1.xpose.msra.mxu0 0.0
    %208 = vmatprep.subr.mxu0 0.0
    %209 = vmatpush1.xpose.msra.mxu0 0.0
    %210 = vmatprep.subr.mxu0 0.0
    %211 = vmatpush1.xpose.msra.mxu0 0.0
    %212 = vmatprep.subr.mxu0 0.0
    %213 = vmatpush1.xpose.msra.mxu0 0.0
    %214 = vmatprep.subr.mxu0 0.0
    %215 = vmatpush1.xpose.msra.mxu0 0.0
    %216 = vmatprep.subr.mxu0 0.0
    %217 = vmatpush1.xpose.msra.mxu0 0.0
    %218 = vmatprep.subr.mxu0 0.0
    %219 = vmatpush1.xpose.msra.mxu0 0.0
    %220 = vmatprep.subr.mxu0 0.0
    %221 = vmatpush1.xpose.msra.mxu0 0.0
    %222 = vmatprep.subr.mxu0 0.0
    %223 = vmatpush1.xpose.msra.mxu0 0.0
    %224 = vmatprep.subr.mxu0 0.0
    %225 = vmatpush1.xpose.msra.mxu0 0.0
    %226 = vmatprep.subr.mxu0 0.0
    %227 = vmatpush1.xpose.msra.mxu0 0.0
    %228 = vmatprep.subr.mxu0 0.0
    %229 = vmatpush1.xpose.msra.mxu0 0.0
    %230 = vmatprep.subr.mxu0 0.0
    %231 = vmatpush1.xpose.msra.mxu0 0.0
    %232 = vmatprep.subr.mxu0 0.0
    %233 = vmatpush1.xpose.msra.mxu0 0.0
    %234 = vmatprep.subr.mxu0 0.0
    %235 = vmatpush1.xpose.msra.mxu0 0.0
    %236 = vmatprep.subr.mxu0 0.0
    %237 = vmatpush1.xpose.msra.mxu0 0.0
    %238 = vmatprep.subr.mxu0 0.0
    %239 = vmatpush1.xpose.msra.mxu0 0.0
    %240 = vmatprep.subr.mxu0 0.0
    %241 = vmatpush1.xpose.msra.mxu0 0.0
    %242 = vmatprep.subr.mxu0 0.0
    %243 = vmatpush1.xpose.msra.mxu0 0.0
    %244 = vmatprep.subr.mxu0 0.0
    %245 = vmatpush1.xpose.msra.mxu0 0.0
    %246 = vmatprep.subr.mxu0 0.0
    %247 = vmatpush1.xpose.msra.mxu0 0.0
    %248 = vmatprep.subr.mxu0 0.0
    %249 = vmatpush1.xpose.msra.mxu0 0.0
    %250 = vmatprep.subr.mxu0 0.0
    %251 = vmatpush1.xpose.msra.mxu0 0.0
    %252 = vmatprep.subr.mxu0 0.0
    %253 = vmatpush1.xpose.msra.mxu0 0.0
    %254 = vmatprep.subr.mxu0 0.0
    %255 = vmatpush1.xpose.msra.mxu0 0.0
    %256 = vmatprep.subr.mxu0 0.0
    %257 = vmatpush1.xpose.msra.mxu0 0.0
    %258 = vmatprep.subr.mxu0 0.0
    %259 = vmatpush1.xpose.msra.mxu0 0.0
    %260 = vmatprep.subr.mxu0 0.0
    %261 = vmatpush1.xpose.msra.mxu0 0.0
    %262 = vmatprep.subr.mxu0 0.0
    %263 = vmatpush1.xpose.msra.mxu0 0.0
    %264 = vmatprep.mubr.f32.mxu0 0.0
    %265 = vmatmul.mubr.f32.gmra.mrb[0].mxu0 %v37
    %v266 = vpop.f32.mrb[0].mxu0
    %v267 = vadd.f32 0.0, %v266
    %v268 = vpop.f32.mrb[0].mxu0
    %269 = vdwg.mxu0
    %v270 = vlaneseq
    %v271 = vshrl.u32 %v270, 7
    %v272 = vsub.s32 0, %v271
    %v273 = vrot.slane %v94, %v272
    %v274 = vsub.f32 %v267, %v273
    %vm275 = vcmask 31744
    %v276 = vsel %vm275, %v274, -inf
    %277 = vmax.xlane.f32.xlu0 %v276
    %v278 = vpop.xlane.xlu0 %277
    %v279 = vsub.f32 %v274, %v278
    %v280 = vmul.f32 %v279, 1.442695
    %v281 = vpow.pop %v280
    %v282 = vsel %vm275, %v281, 0.0
    %283 = vadd.xlane.f32.xlu0 %v282
    %v284 = vpop.xlane.xlu0 %283
    %v285 = vrcp.pop %v284
    %v286 = vmul.f32 %v281, %v285
    %v287 = vmul.f32 %v286, 0.9
    %v288 = vadd.f32 %v287, 0.025
    %v289 = vmul.f32 %v288, 0.9
    %v290 = vadd.f32 %v289, 0.0125
    %v291 = vlog2.pop %v199
    %v292 = vmul.f32 %v291, 0.6931472
    %v293 = vsel %vm186, %v292, 0.0
    %294 = vadd.xlane.f32.xlu0 %v293
    %v295 = vpop.xlane.xlu0 %294
    %v296 = vrot.slane %v295, 4
    %v297 = vadd.f32 %v295, %v296
    %v298 = vrot.slane %v297, 2
    %v299 = vadd.f32 %v297, %v298
    %v300 = vrot.slane %v299, 1
    %v301 = vadd.f32 %v299, %v300
    %s302 = vtos %v301
    %v303 = vrcp.pop 32.0
    %s304 = vtos %v303
    %s305 = smul.f32 %s302, %s304
    %s306 = ssub.f32 -1.3862944, %s305
    %s307 = smul.f32 %s306, 0.25
    %v308 = vmul.f32 %v37, 1.4142135
    %309 = vmatprep.subr.mxu0 0.0
    %310 = vmatpush1.xpose.msra.mxu0 %v308
    %311 = vmatprep.subr.mxu0 0.0
    %312 = vmatpush1.xpose.msra.mxu0 0.0
    %313 = vmatprep.subr.mxu0 0.0
    %314 = vmatpush1.xpose.msra.mxu0 0.0
    %315 = vmatprep.subr.mxu0 0.0
    %316 = vmatpush1.xpose.msra.mxu0 0.0
    %317 = vmatprep.subr.mxu0 0.0
    %318 = vmatpush1.xpose.msra.mxu0 0.0
    %319 = vmatprep.subr.mxu0 0.0
    %320 = vmatpush1.xpose.msra.mxu0 0.0
    %321 = vmatprep.subr.mxu0 0.0
    %322 = vmatpush1.xpose.msra.mxu0 0.0
    %323 = vmatprep.subr.mxu0 0.0
    %324 = vmatpush1.xpose.msra.mxu0 0.0
    %325 = vmatprep.subr.mxu0 0.0
    %326 = vmatpush1.xpose.msra.mxu0 0.0
    %327 = vmatprep.subr.mxu0 0.0
    %328 = vmatpush1.xpose.msra.mxu0 0.0
    %329 = vmatprep.subr.mxu0 0.0
    %330 = vmatpush1.xpose.msra.mxu0 0.0
    %331 = vmatprep.subr.mxu0 0.0
    %332 = vmatpush1.xpose.msra.mxu0 0.0
    %333 = vmatprep.subr.mxu0 0.0
    %334 = vmatpush1.xpose.msra.mxu0 0.0
    %335 = vmatprep.subr.mxu0 0.0
    %336 = vmatpush1.xpose.msra.mxu0 0.0
    %337 = vmatprep.subr.mxu0 0.0
    %338 = vmatpush1.xpose.msra.mxu0 0.0
    %339 = vmatprep.subr.mxu0 0.0
    %340 = vmatpush1.xpose.msra.mxu0 0.0
    %341 = vmatprep.subr.mxu0 0.0
    %342 = vmatpush1.xpose.msra.mxu0 0.0
    %343 = vmatprep.subr.mxu0 0.0
    %344 = vmatpush1.xpose.msra.mxu0 0.0
    %345 = vmatprep.subr.mxu0 0.0
    %346 = vmatpush1.xpose.msra.mxu0 0.0
    %347 = vmatprep.subr.mxu0 0.0
    %348 = vmatpush1.xpose.msra.mxu0 0.0
    %349 = vmatprep.subr.mxu0 0.0
    %350 = vmatpush1.xpose.msra.mxu0 0.0
    %351 = vmatprep.subr.mxu0 0.0
    %352 = vmatpush1.xpose.msra.mxu0 0.0
    %353 = vmatprep.subr.mxu0 0.0
    %354 = vmatpush1.xpose.msra.mxu0 0.0
    %355 = vmatprep.subr.mxu0 0.0
    %356 = vmatpush1.xpose.msra.mxu0 0.0
    %357 = vmatprep.subr.mxu0 0.0
    %358 = vmatpush1.xpose.msra.mxu0 0.0
    %359 = vmatprep.subr.mxu0 0.0
    %360 = vmatpush1.xpose.msra.mxu0 0.0
    %361 = vmatprep.subr.mxu0 0.0
    %362 = vmatpush1.xpose.msra.mxu0 0.0
    %363 = vmatprep.subr.mxu0 0.0
    %364 = vmatpush1.xpose.msra.mxu0 0.0
    %365 = vmatprep.subr.mxu0 0.0
    %366 = vmatpush1.xpose.msra.mxu0 0.0
    %367 = vmatprep.subr.mxu0 0.0
    %368 = vmatpush1.xpose.msra.mxu0 0.0
    %369 = vmatprep.subr.mxu0 0.0
    %370 = vmatpush1.xpose.msra.mxu0 0.0
    %371 = vmatprep.subr.mxu0 0.0
    %372 = vmatpush1.xpose.msra.mxu0 0.0
    %373 = vmatprep.mubr.f32.mxu0 0.0
    %374 = vmatmul.mubr.f32.gmra.mrb[0].mxu0 %v308
    %v375 = vpop.f32.mrb[0].mxu0
    %v376 = vadd.f32 0.0, %v375
    %v377 = vpop.f32.mrb[0].mxu0
    %378 = vdwg.mxu0
    %v379 = vsub.f32 %v376, %v184
    %v380 = vlaneseq
    %v381 = vshrl.u32 %v380, 7
    %v382 = vlaneseq
    %v383 = vand.u32 %v382, 127
    %vm384 = vcmp.eq.s32.totalorder %v381, %v383
    %v385 = vsub.f32 %v379, 1000.0
    %v386 = vsel %vm384, %v385, %v379
    %vm387 = vcmask 64512
    %v388 = vsel %vm387, %v386, -inf
    %389 = vmax.xlane.f32.xlu0 %v388
    %v390 = vpop.xlane.xlu0 %389
    %v391 = vsub.f32 %v386, %v390
    %v392 = vmul.f32 %v391, 1.442695
    %v393 = vpow.pop %v392
    %v394 = vsel %vm387, %v393, 0.0
    %395 = vadd.xlane.f32.xlu0 %v394
    %v396 = vpop.xlane.xlu0 %395
    %v397 = vrcp.pop %v396
    %398 = vxpose.xlu0.b32.start [1/16] %v397, 128
    %399 = vxpose.xlu0.b32.cont [2/16] 0.0, 128
    %400 = vxpose.xlu0.b32.cont [3/16] 0.0, 128
    %401 = vxpose.xlu0.b32.cont [4/16] 0.0, 128
    %402 = vxpose.xlu0.b32.cont [5/16] 0.0, 128
    %403 = vxpose.xlu0.b32.cont [6/16] 0.0, 128
    %404 = vxpose.xlu0.b32.cont [7/16] 0.0, 128
    %405 = vxpose.xlu0.b32.cont [8/16] 0.0, 128
    %406 = vxpose.xlu0.b32.cont [9/16] 0.0, 128
    %407 = vxpose.xlu0.b32.cont [10/16] 0.0, 128
    %408 = vxpose.xlu0.b32.cont [11/16] 0.0, 128
    %409 = vxpose.xlu0.b32.cont [12/16] 0.0, 128
    %410 = vxpose.xlu0.b32.cont [13/16] 0.0, 128
    %411 = vxpose.xlu0.b32.cont [14/16] 0.0, 128
    %412 = vxpose.xlu0.b32.cont [15/16] 0.0, 128
    %413 = vxpose.xlu0.b32.end [16/16] 0.0, 128
    %v414 = vpop.trf.xlu0
    %v415 = vpop.trf.xlu0
    %v416 = vpop.trf.xlu0
    %v417 = vpop.trf.xlu0
    %v418 = vpop.trf.xlu0
    %v419 = vpop.trf.xlu0
    %v420 = vpop.trf.xlu0
    %v421 = vpop.trf.xlu0
    %v422 = vpop.trf.xlu0
    %v423 = vpop.trf.xlu0
    %v424 = vpop.trf.xlu0
    %v425 = vpop.trf.xlu0
    %v426 = vpop.trf.xlu0
    %v427 = vpop.trf.xlu0
    %v428 = vpop.trf.xlu0
    %v429 = vpop.trf.xlu0
    %v431 = vsel %vm387, %v199, 0
    %433 = vmatprep.subr.mxu0 0.0
    %434 = vmatpush1.msra.mxu0 %v290
    %435 = vmatprep.subr.mxu0 0.0
    %436 = vmatpush1.msra.mxu0 0.0
    %437 = vmatprep.subr.mxu0 0.0
    %438 = vmatpush1.msra.mxu0 0.0
    %439 = vmatprep.subr.mxu0 0.0
    %440 = vmatpush1.msra.mxu0 0.0
    %441 = vmatprep.subr.mxu0 0.0
    %442 = vmatpush1.msra.mxu0 0.0
    %443 = vmatprep.subr.mxu0 0.0
    %444 = vmatpush1.msra.mxu0 0.0
    %445 = vmatprep.subr.mxu0 0.0
    %446 = vmatpush1.msra.mxu0 0.0
    %447 = vmatprep.subr.mxu0 0.0
    %448 = vmatpush1.msra.mxu0 0.0
    %449 = vmatprep.subr.mxu0 0.0
    %450 = vmatpush1.msra.mxu0 0.0
    %451 = vmatprep.subr.mxu0 0.0
    %452 = vmatpush1.msra.mxu0 0.0
    %453 = vmatprep.subr.mxu0 0.0
    %454 = vmatpush1.msra.mxu0 0.0
    %455 = vmatprep.subr.mxu0 0.0
    %456 = vmatpush1.msra.mxu0 0.0
    %457 = vmatprep.subr.mxu0 0.0
    %458 = vmatpush1.msra.mxu0 0.0
    %459 = vmatprep.subr.mxu0 0.0
    %460 = vmatpush1.msra.mxu0 0.0
    %461 = vmatprep.subr.mxu0 0.0
    %462 = vmatpush1.msra.mxu0 0.0
    %463 = vmatprep.subr.mxu0 0.0
    %464 = vmatpush1.msra.mxu0 0.0
    %465 = vmatprep.subr.mxu0 0.0
    %466 = vmatpush1.msra.mxu0 0.0
    %467 = vmatprep.subr.mxu0 0.0
    %468 = vmatpush1.msra.mxu0 0.0
    %469 = vmatprep.subr.mxu0 0.0
    %470 = vmatpush1.msra.mxu0 0.0
    %471 = vmatprep.subr.mxu0 0.0
    %472 = vmatpush1.msra.mxu0 0.0
    %473 = vmatprep.subr.mxu0 0.0
    %474 = vmatpush1.msra.mxu0 0.0
    %475 = vmatprep.subr.mxu0 0.0
    %476 = vmatpush1.msra.mxu0 0.0
    %477 = vmatprep.subr.mxu0 0.0
    %478 = vmatpush1.msra.mxu0 0.0
    %479 = vmatprep.subr.mxu0 0.0
    %480 = vmatpush1.msra.mxu0 0.0
    %481 = vmatprep.subr.mxu0 0.0
    %482 = vmatpush1.msra.mxu0 0.0
    %483 = vmatprep.subr.mxu0 0.0
    %484 = vmatpush1.msra.mxu0 0.0
    %485 = vmatprep.subr.mxu0 0.0
    %486 = vmatpush1.msra.mxu0 0.0
    %487 = vmatprep.subr.mxu0 0.0
    %488 = vmatpush1.msra.mxu0 0.0
    %489 = vmatprep.subr.mxu0 0.0
    %490 = vmatpush1.msra.mxu0 0.0
    %491 = vmatprep.subr.mxu0 0.0
    %492 = vmatpush1.msra.mxu0 0.0
    %493 = vmatprep.subr.mxu0 0.0
    %494 = vmatpush1.msra.mxu0 0.0
    %495 = vmatprep.subr.mxu0 0.0
    %496 = vmatpush1.msra.mxu0 0.0
    %497 = vmatprep.mubr.f32.mxu0 0.0
    %498 = vmatmul.mubr.f32.gmra.mrb[0].mxu0 %v431
    %v499 = vpop.f32.mrb[0].mxu0
    %v500 = vadd.f32 0.0, %v499
    %v501 = vpop.f32.mrb[0].mxu0
    %502 = vdwg.mxu0
    %v503 = vlog2.pop %v500
    %v504 = vmul.f32 %v503, 0.6931472
    %vm505 = vcmask 27648
    %v506 = vsel %vm505, %v504, 0.0
    %507 = vadd.xlane.f32.xlu0 %v506
    %v508 = vpop.xlane.xlu0 %507
    %v509 = vrot.slane %v508, 4
    %v510 = vadd.f32 %v508, %v509
    %v511 = vrot.slane %v510, 2
    %v512 = vadd.f32 %v510, %v511
    %v513 = vrot.slane %v512, 1
    %v514 = vadd.f32 %v512, %v513
    %s515 = vtos %v514
    %v516 = vrcp.pop 16.0
    %s517 = vtos %v516
    %s518 = smul.f32 %s515, %s517
    %s519 = ssub.f32 -1.3862944, %s518
    %s520 = smul.f32 %s519, 0.25
    %v521 = vlaneseq
    %v522 = vshrl.u32 %v521, 7
    %v523 = vsub.s32 0, %v522
    %v524 = vrot.slane %v414, %v523
    %v525 = vmul.f32 %v199, %v524
    %v527 = vsel %vm387, %v525, 0
    %529 = vmatprep.subr.mxu0 0.0
    %530 = vmatpush1.msra.mxu0 %v393
    %531 = vmatprep.subr.mxu0 0.0
    %532 = vmatpush1.msra.mxu0 0.0
    %533 = vmatprep.subr.mxu0 0.0
    %534 = vmatpush1.msra.mxu0 0.0
    %535 = vmatprep.subr.mxu0 0.0
    %536 = vmatpush1.msra.mxu0 0.0
    %537 = vmatprep.subr.mxu0 0.0
    %538 = vmatpush1.msra.mxu0 0.0
    %539 = vmatprep.subr.mxu0 0.0
    %540 = vmatpush1.msra.mxu0 0.0
    %541 = vmatprep.subr.mxu0 0.0
    %542 = vmatpush1.msra.mxu0 0.0
    %543 = vmatprep.subr.mxu0 0.0
    %544 = vmatpush1.msra.mxu0 0.0
    %545 = vmatprep.subr.mxu0 0.0
    %546 = vmatpush1.msra.mxu0 0.0
    %547 = vmatprep.subr.mxu0 0.0
    %548 = vmatpush1.msra.mxu0 0.0
    %549 = vmatprep.subr.mxu0 0.0
    %550 = vmatpush1.msra.mxu0 0.0
    %551 = vmatprep.subr.mxu0 0.0
    %552 = vmatpush1.msra.mxu0 0.0
    %553 = vmatprep.subr.mxu0 0.0
    %554 = vmatpush1.msra.mxu0 0.0
    %555 = vmatprep.subr.mxu0 0.0
    %556 = vmatpush1.msra.mxu0 0.0
    %557 = vmatprep.subr.mxu0 0.0
    %558 = vmatpush1.msra.mxu0 0.0
    %559 = vmatprep.subr.mxu0 0.0
    %560 = vmatpush1.msra.mxu0 0.0
    %561 = vmatprep.subr.mxu0 0.0
    %562 = vmatpush1.msra.mxu0 0.0
    %563 = vmatprep.subr.mxu0 0.0
    %564 = vmatpush1.msra.mxu0 0.0
    %565 = vmatprep.subr.mxu0 0.0
    %566 = vmatpush1.msra.mxu0 0.0
    %567 = vmatprep.subr.mxu0 0.0
    %568 = vmatpush1.msra.mxu0 0.0
    %569 = vmatprep.subr.mxu0 0.0
    %570 = vmatpush1.msra.mxu0 0.0
    %571 = vmatprep.subr.mxu0 0.0
    %572 = vmatpush1.msra.mxu0 0.0
    %573 = vmatprep.subr.mxu0 0.0
    %574 = vmatpush1.msra.mxu0 0.0
    %575 = vmatprep.subr.mxu0 0.0
    %576 = vmatpush1.msra.mxu0 0.0
    %577 = vmatprep.subr.mxu0 0.0
    %578 = vmatpush1.msra.mxu0 0.0
    %579 = vmatprep.subr.mxu0 0.0
    %580 = vmatpush1.msra.mxu0 0.0
    %581 = vmatprep.subr.mxu0 0.0
    %582 = vmatpush1.msra.mxu0 0.0
    %583 = vmatprep.subr.mxu0 0.0
    %584 = vmatpush1.msra.mxu0 0.0
    %585 = vmatprep.subr.mxu0 0.0
    %586 = vmatpush1.msra.mxu0 0.0
    %587 = vmatprep.subr.mxu0 0.0
    %588 = vmatpush1.msra.mxu0 0.0
    %589 = vmatprep.subr.mxu0 0.0
    %590 = vmatpush1.msra.mxu0 0.0
    %591 = vmatprep.subr.mxu0 0.0
    %592 = vmatpush1.msra.mxu0 0.0
    %593 = vmatprep.mubr.f32.mxu0 0.0
    %594 = vmatmul.mubr.f32.gmra.mrb[0].mxu0 %v527
    %v595 = vpop.f32.mrb[0].mxu0
    %v596 = vadd.f32 0.0, %v595
    %v597 = vpop.f32.mrb[0].mxu0
    %598 = vdwg.mxu0
    %v600 = vsel %vm387, %v596, 0
    %602 = vmatprep.subr.mxu0 0.0
    %603 = vmatpush1.msra.mxu0 %v290
    %604 = vmatprep.subr.mxu0 0.0
    %605 = vmatpush1.msra.mxu0 0.0
    %606 = vmatprep.subr.mxu0 0.0
    %607 = vmatpush1.msra.mxu0 0.0
    %608 = vmatprep.subr.mxu0 0.0
    %609 = vmatpush1.msra.mxu0 0.0
    %610 = vmatprep.subr.mxu0 0.0
    %611 = vmatpush1.msra.mxu0 0.0
    %612 = vmatprep.subr.mxu0 0.0
    %613 = vmatpush1.msra.mxu0 0.0
    %614 = vmatprep.subr.mxu0 0.0
    %615 = vmatpush1.msra.mxu0 0.0
    %616 = vmatprep.subr.mxu0 0.0
    %617 = vmatpush1.msra.mxu0 0.0
    %618 = vmatprep.subr.mxu0 0.0
    %619 = vmatpush1.msra.mxu0 0.0
    %620 = vmatprep.subr.mxu0 0.0
    %621 = vmatpush1.msra.mxu0 0.0
    %622 = vmatprep.subr.mxu0 0.0
    %623 = vmatpush1.msra.mxu0 0.0
    %624 = vmatprep.subr.mxu0 0.0
    %625 = vmatpush1.msra.mxu0 0.0
    %626 = vmatprep.subr.mxu0 0.0
    %627 = vmatpush1.msra.mxu0 0.0
    %628 = vmatprep.subr.mxu0 0.0
    %629 = vmatpush1.msra.mxu0 0.0
    %630 = vmatprep.subr.mxu0 0.0
    %631 = vmatpush1.msra.mxu0 0.0
    %632 = vmatprep.subr.mxu0 0.0
    %633 = vmatpush1.msra.mxu0 0.0
    %634 = vmatprep.subr.mxu0 0.0
    %635 = vmatpush1.msra.mxu0 0.0
    %636 = vmatprep.subr.mxu0 0.0
    %637 = vmatpush1.msra.mxu0 0.0
    %638 = vmatprep.subr.mxu0 0.0
    %639 = vmatpush1.msra.mxu0 0.0
    %640 = vmatprep.subr.mxu0 0.0
    %641 = vmatpush1.msra.mxu0 0.0
    %642 = vmatprep.subr.mxu0 0.0
    %643 = vmatpush1.msra.mxu0 0.0
    %644 = vmatprep.subr.mxu0 0.0
    %645 = vmatpush1.msra.mxu0 0.0
    %646 = vmatprep.subr.mxu0 0.0
    %647 = vmatpush1.msra.mxu0 0.0
    %648 = vmatprep.subr.mxu0 0.0
    %649 = vmatpush1.msra.mxu0 0.0
    %650 = vmatprep.subr.mxu0 0.0
    %651 = vmatpush1.msra.mxu0 0.0
    %652 = vmatprep.subr.mxu0 0.0
    %653 = vmatpush1.msra.mxu0 0.0
    %654 = vmatprep.subr.mxu0 0.0
    %655 = vmatpush1.msra.mxu0 0.0
    %656 = vmatprep.subr.mxu0 0.0
    %657 = vmatpush1.msra.mxu0 0.0
    %658 = vmatprep.subr.mxu0 0.0
    %659 = vmatpush1.msra.mxu0 0.0
    %660 = vmatprep.subr.mxu0 0.0
    %661 = vmatpush1.msra.mxu0 0.0
    %662 = vmatprep.subr.mxu0 0.0
    %663 = vmatpush1.msra.mxu0 0.0
    %664 = vmatprep.subr.mxu0 0.0
    %665 = vmatpush1.msra.mxu0 0.0
    %666 = vmatprep.mubr.f32.mxu0 0.0
    %667 = vmatmul.mubr.f32.gmra.mrb[0].mxu0 %v600
    %v668 = vpop.f32.mrb[0].mxu0
    %v669 = vadd.f32 0.0, %v668
    %v670 = vpop.f32.mrb[0].mxu0
    %671 = vdwg.mxu0
    %v672 = vlog2.pop %v669
    %v673 = vmul.f32 %v672, 0.6931472
    %v674 = vsel %vm505, %v673, 0.0
    %675 = vadd.xlane.f32.xlu0 %v674
    %v676 = vpop.xlane.xlu0 %675
    %v677 = vrot.slane %v676, 4
    %v678 = vadd.f32 %v676, %v677
    %v679 = vrot.slane %v678, 2
    %v680 = vadd.f32 %v678, %v679
    %v681 = vrot.slane %v680, 1
    %v682 = vadd.f32 %v680, %v681
    %s683 = vtos %v682
    %v684 = vrcp.pop 16.0
    %s685 = vtos %v684
    %s686 = smul.f32 %s683, %s685
    %s687 = ssub.f32 -1.3862944, %s686
    %s688 = smul.f32 %s687, 0.25
    %s689 = smul.f32 %s688, 0.7
    %s690 = sadd.f32 %s520, %s689
    %v691 = vmul.f32 %v596, %v524
    %v693 = vsel %vm387, %v691, 0
    %695 = vmatprep.subr.mxu0 0.0
    %696 = vmatpush1.msra.mxu0 %v393
    %697 = vmatprep.subr.mxu0 0.0
    %698 = vmatpush1.msra.mxu0 0.0
    %699 = vmatprep.subr.mxu0 0.0
    %700 = vmatpush1.msra.mxu0 0.0
    %701 = vmatprep.subr.mxu0 0.0
    %702 = vmatpush1.msra.mxu0 0.0
    %703 = vmatprep.subr.mxu0 0.0
    %704 = vmatpush1.msra.mxu0 0.0
    %705 = vmatprep.subr.mxu0 0.0
    %706 = vmatpush1.msra.mxu0 0.0
    %707 = vmatprep.subr.mxu0 0.0
    %708 = vmatpush1.msra.mxu0 0.0
    %709 = vmatprep.subr.mxu0 0.0
    %710 = vmatpush1.msra.mxu0 0.0
    %711 = vmatprep.subr.mxu0 0.0
    %712 = vmatpush1.msra.mxu0 0.0
    %713 = vmatprep.subr.mxu0 0.0
    %714 = vmatpush1.msra.mxu0 0.0
    %715 = vmatprep.subr.mxu0 0.0
    %716 = vmatpush1.msra.mxu0 0.0
    %717 = vmatprep.subr.mxu0 0.0
    %718 = vmatpush1.msra.mxu0 0.0
    %719 = vmatprep.subr.mxu0 0.0
    %720 = vmatpush1.msra.mxu0 0.0
    %721 = vmatprep.subr.mxu0 0.0
    %722 = vmatpush1.msra.mxu0 0.0
    %723 = vmatprep.subr.mxu0 0.0
    %724 = vmatpush1.msra.mxu0 0.0
    %725 = vmatprep.subr.mxu0 0.0
    %726 = vmatpush1.msra.mxu0 0.0
    %727 = vmatprep.subr.mxu0 0.0
    %728 = vmatpush1.msra.mxu0 0.0
    %729 = vmatprep.subr.mxu0 0.0
    %730 = vmatpush1.msra.mxu0 0.0
    %731 = vmatprep.subr.mxu0 0.0
    %732 = vmatpush1.msra.mxu0 0.0
    %733 = vmatprep.subr.mxu0 0.0
    %734 = vmatpush1.msra.mxu0 0.0
    %735 = vmatprep.subr.mxu0 0.0
    %736 = vmatpush1.msra.mxu0 0.0
    %737 = vmatprep.subr.mxu0 0.0
    %738 = vmatpush1.msra.mxu0 0.0
    %739 = vmatprep.subr.mxu0 0.0
    %740 = vmatpush1.msra.mxu0 0.0
    %741 = vmatprep.subr.mxu0 0.0
    %742 = vmatpush1.msra.mxu0 0.0
    %743 = vmatprep.subr.mxu0 0.0
    %744 = vmatpush1.msra.mxu0 0.0
    %745 = vmatprep.subr.mxu0 0.0
    %746 = vmatpush1.msra.mxu0 0.0
    %747 = vmatprep.subr.mxu0 0.0
    %748 = vmatpush1.msra.mxu0 0.0
    %749 = vmatprep.subr.mxu0 0.0
    %750 = vmatpush1.msra.mxu0 0.0
    %751 = vmatprep.subr.mxu0 0.0
    %752 = vmatpush1.msra.mxu0 0.0
    %753 = vmatprep.subr.mxu0 0.0
    %754 = vmatpush1.msra.mxu0 0.0
    %755 = vmatprep.subr.mxu0 0.0
    %756 = vmatpush1.msra.mxu0 0.0
    %757 = vmatprep.subr.mxu0 0.0
    %758 = vmatpush1.msra.mxu0 0.0
    %759 = vmatprep.mubr.f32.mxu0 0.0
    %760 = vmatmul.mubr.f32.gmra.mrb[0].mxu0 %v693
    %v761 = vpop.f32.mrb[0].mxu0
    %v762 = vadd.f32 0.0, %v761
    %v763 = vpop.f32.mrb[0].mxu0
    %764 = vdwg.mxu0
    %v766 = vsel %vm387, %v762, 0
    %768 = vmatprep.subr.mxu0 0.0
    %769 = vmatpush1.msra.mxu0 %v290
    %770 = vmatprep.subr.mxu0 0.0
    %771 = vmatpush1.msra.mxu0 0.0
    %772 = vmatprep.subr.mxu0 0.0
    %773 = vmatpush1.msra.mxu0 0.0
    %774 = vmatprep.subr.mxu0 0.0
    %775 = vmatpush1.msra.mxu0 0.0
    %776 = vmatprep.subr.mxu0 0.0
    %777 = vmatpush1.msra.mxu0 0.0
    %778 = vmatprep.subr.mxu0 0.0
    %779 = vmatpush1.msra.mxu0 0.0
    %780 = vmatprep.subr.mxu0 0.0
    %781 = vmatpush1.msra.mxu0 0.0
    %782 = vmatprep.subr.mxu0 0.0
    %783 = vmatpush1.msra.mxu0 0.0
    %784 = vmatprep.subr.mxu0 0.0
    %785 = vmatpush1.msra.mxu0 0.0
    %786 = vmatprep.subr.mxu0 0.0
    %787 = vmatpush1.msra.mxu0 0.0
    %788 = vmatprep.subr.mxu0 0.0
    %789 = vmatpush1.msra.mxu0 0.0
    %790 = vmatprep.subr.mxu0 0.0
    %791 = vmatpush1.msra.mxu0 0.0
    %792 = vmatprep.subr.mxu0 0.0
    %793 = vmatpush1.msra.mxu0 0.0
    %794 = vmatprep.subr.mxu0 0.0
    %795 = vmatpush1.msra.mxu0 0.0
    %796 = vmatprep.subr.mxu0 0.0
    %797 = vmatpush1.msra.mxu0 0.0
    %798 = vmatprep.subr.mxu0 0.0
    %799 = vmatpush1.msra.mxu0 0.0
    %800 = vmatprep.subr.mxu0 0.0
    %801 = vmatpush1.msra.mxu0 0.0
    %802 = vmatprep.subr.mxu0 0.0
    %803 = vmatpush1.msra.mxu0 0.0
    %804 = vmatprep.subr.mxu0 0.0
    %805 = vmatpush1.msra.mxu0 0.0
    %806 = vmatprep.subr.mxu0 0.0
    %807 = vmatpush1.msra.mxu0 0.0
    %808 = vmatprep.subr.mxu0 0.0
    %809 = vmatpush1.msra.mxu0 0.0
    %810 = vmatprep.subr.mxu0 0.0
    %811 = vmatpush1.msra.mxu0 0.0
    %812 = vmatprep.subr.mxu0 0.0
    %813 = vmatpush1.msra.mxu0 0.0
    %814 = vmatprep.subr.mxu0 0.0
    %815 = vmatpush1.msra.mxu0 0.0
    %816 = vmatprep.subr.mxu0 0.0
    %817 = vmatpush1.msra.mxu0 0.0
    %818 = vmatprep.subr.mxu0 0.0
    %819 = vmatpush1.msra.mxu0 0.0
    %820 = vmatprep.subr.mxu0 0.0
    %821 = vmatpush1.msra.mxu0 0.0
    %822 = vmatprep.subr.mxu0 0.0
    %823 = vmatpush1.msra.mxu0 0.0
    %824 = vmatprep.subr.mxu0 0.0
    %825 = vmatpush1.msra.mxu0 0.0
    %826 = vmatprep.subr.mxu0 0.0
    %827 = vmatpush1.msra.mxu0 0.0
    %828 = vmatprep.subr.mxu0 0.0
    %829 = vmatpush1.msra.mxu0 0.0
    %830 = vmatprep.subr.mxu0 0.0
    %831 = vmatpush1.msra.mxu0 0.0
    %832 = vmatprep.mubr.f32.mxu0 0.0
    %833 = vmatmul.mubr.f32.gmra.mrb[0].mxu0 %v766
    %v834 = vpop.f32.mrb[0].mxu0
    %v835 = vadd.f32 0.0, %v834
    %v836 = vpop.f32.mrb[0].mxu0
    %837 = vdwg.mxu0
    %v838 = vlog2.pop %v835
    %v839 = vmul.f32 %v838, 0.6931472
    %v840 = vsel %vm505, %v839, 0.0
    %841 = vadd.xlane.f32.xlu0 %v840
    %v842 = vpop.xlane.xlu0 %841
    %v843 = vrot.slane %v842, 4
    %v844 = vadd.f32 %v842, %v843
    %v845 = vrot.slane %v844, 2
    %v846 = vadd.f32 %v844, %v845
    %v847 = vrot.slane %v846, 1
    %v848 = vadd.f32 %v846, %v847
    %s849 = vtos %v848
    %v850 = vrcp.pop 16.0
    %s851 = vtos %v850
    %s852 = smul.f32 %s849, %s851
    %s853 = ssub.f32 -1.3862944, %s852
    %s854 = smul.f32 %s853, 0.25
    %s855 = smul.f32 %s854, 0.49
    %s856 = sadd.f32 %s690, %s855
    %s857 = sadd.f32 %s856, %s307
    %v858 = vstv %s857
    %859 = vst [vmem:[#allocation7] sm:$0xff] %v858
    // Predicated region
    $region18: #{tpu_custom_call.1} parent=1 // pred_check
      _
    $region19: #{tpu_custom_call.1} parent=1 // pred_check_branch
      %861 = sbr.rel (0) target = $region21
    $region20: #{tpu_custom_call.1} parent=1 // pred_region
      %s863 = ssub.s32 128, 128
      %864 = vsyncadd [#allocation4], %s863
      %s866 = sshll.u32 [#allocation7], 4
      %s867 = int_to_ptr.vmem [resolvable:$true] %s866
      %869 = dma.vmem_to_hbm [thread:$0]  %s867, 128, %s2, [#allocation4]
    $region21: #{tpu_custom_call.1} parent=1 // pred_fallthru
      _
    // Predicated region
    $region22: #{tpu_custom_call.1} parent=1 // pred_check
      _
    $region23: #{tpu_custom_call.1} parent=1 // pred_check_branch
      %871 = sbr.rel (0) target = $region25
    $region24: #{tpu_custom_call.1} parent=1 // pred_region
      %872 = dma.done [#allocation4], 128
    $region25: #{tpu_custom_call.1} parent=1 // pred_fallthru
      _
    %873 = vsyncpa [#allocation3], 1
    %874 = vsyncpa [#allocation6], 1
    %875 = vsyncpa [#allocation4], 1

</llo_original>
